<compile_context>
chip_gen: v7x
topology: tpu7x:2x2x1
jax: 0.10.0
libtpu: 0.0.40
codegen_flags: <defaults>
</compile_context>

<pallas_src>
import functools
import math

import jax
import jax.numpy as jnp
from jax.experimental import pallas as pl
from jax.experimental.pallas import tpu as pltpu

NEG_SLOPE = 0.01  # nn.LeakyReLU() default negative_slope


def _round_up(x, m):
    return ((x + m - 1) // m) * m


# -----------------------------------------------------------------------------
# Fused N-layer kernel: activations never leave VMEM between layers.
# -----------------------------------------------------------------------------
def _make_fused_stack_kernel(n_layers):
    def kernel(x_ref, w_ref, b_ref, o_ref):
        # x_ref: (TILE_R, Kp)   w_ref: (N, Kp, Fp)   b_ref: (N, 1, Fp)
        # o_ref: (TILE_R, Fp)
        act = x_ref[...]
        # N is small and static -> fully unrolled (same effect as
        # lax.fori_loop(..., unroll=True)): each layer is an MXU matmul with
        # an f32 accumulator followed by a VPU bias-add + LeakyReLU.
        for layer in range(n_layers):
            y = jnp.dot(act, w_ref[layer], preferred_element_type=jnp.float32)
            y = y + b_ref[layer]                       # (1, Fp) lane-broadcast
            act = jnp.where(y >= 0.0, y, NEG_SLOPE * y)
        o_ref[...] = act.astype(o_ref.dtype)
    return kernel


def _derive_row_tiling(n_rows, k_pad, f_pad, n_layers,
                       budget_bytes=40 * 1024 * 1024, max_tile_rows=1024):
    """Pick (tile_rows, n_tiles) so (a) tiles are balanced (no near-empty last
    tile wasting HBM traffic) and (b) double-buffered activation tiles plus the
    resident (double-buffered) params fit well inside v7x's 64 MiB VMEM
    (v5e/v6e's 128 MiB is covered a fortiori)."""
    param_bytes = 2 * n_layers * (k_pad * f_pad + f_pad) * 4   # dbl-buffered W+b
    per_row_bytes = 2 * (k_pad + f_pad) * 4                    # dbl-buffered in+out
    avail = max(budget_bytes - param_bytes, 8 * per_row_bytes)
    cap = min(max_tile_rows, max(8, (avail // per_row_bytes) // 8 * 8))
    n_tiles = max(1, pl.cdiv(n_rows, cap))
    tile_rows = _round_up(pl.cdiv(n_rows, n_tiles), 8)
    return tile_rows, n_tiles, param_bytes, per_row_bytes


@functools.partial(jax.jit, static_argnames=("k_features", "f_features", "out_shape"))
def _encoder2_apply_fused(x, w_stack, b_stack, *, k_features, f_features, out_shape):
    n_layers, k_pad, f_pad = w_stack.shape
    lead = x.shape[:-1]
    n_rows = math.prod(lead)
    x2d = x.reshape((n_rows, x.shape[-1]))

    tile_rows, n_tiles, param_bytes, per_row_bytes = _derive_row_tiling(
        n_rows, k_pad, f_pad, n_layers)
    rows_pad = tile_rows * n_tiles

    # Lane/sublane-dense activation slab; padded rows/lanes are sliced off
    # after the final layer (padded K columns hit zero weight rows, padded F
    # lanes hit zero weight columns, so they never pollute valid outputs).
    x_p = jnp.zeros((rows_pad, k_pad), x2d.dtype).at[:n_rows, :k_features].set(x2d)

    vmem_need = param_bytes + tile_rows * per_row_bytes
    vmem_limit = int(min(max(vmem_need + (8 << 20), 32 << 20), 64 << 20))

    out_p = pl.pallas_call(
        _make_fused_stack_kernel(n_layers),
        out_shape=jax.ShapeDtypeStruct((rows_pad, f_pad), x.dtype),
        grid=(n_tiles,),
        in_specs=[
            pl.BlockSpec((tile_rows, k_pad), lambda i: (i, 0)),   # row-tiled acts
            # Resident stacked weights / biases (constant index_map).
            # TODO(synk): when F*K grows, single-buffer these with
            # pipeline_mode=pl.Buffered(1) to halve their VMEM footprint (v7x).
            pl.BlockSpec((n_layers, k_pad, f_pad), lambda i: (0, 0, 0)),
            pl.BlockSpec((n_layers, 1, f_pad), lambda i: (0, 0, 0)),
        ],
        out_specs=pl.BlockSpec((tile_rows, f_pad), lambda i: (i, 0)),
        compiler_params=pltpu.CompilerParams(
            dimension_semantics=("parallel",),
            vmem_limit_bytes=vmem_limit),
    )(x_p, w_stack, b_stack)

    out2d = out_p[:n_rows, :f_features]
    return out2d.reshape(out_shape)


# -----------------------------------------------------------------------------
# Parameter prep (hoisted out of the forward path — done once).
# -----------------------------------------------------------------------------
def prepare_encoder2_params(layer_params):
    """Transpose + zero-pad each layer's (W, b) to lane-dense (Kp, Fp)/(1, Fp)
    and stack the N cloned layers so the whole stack rides one pallas_call."""
    f_features, k_features = layer_params[0][0].shape
    for w, b in layer_params:
        assert w.shape == (f_features, k_features) and b.shape == (f_features,), (
            "Encoder2 clones identical layers; all weights must share a shape.")
    n_layers = len(layer_params)
    if n_layers > 1:
        # Needed for the stack to compose at all (true for cloned layers).
        assert f_features == k_features, (
            "Fused stack assumes out_features == in_features so layers compose.")
    k_pad = _round_up(k_features, 128)
    f_pad = _round_up(f_features, 128)
    w_stack = jnp.stack(
        [jnp.zeros((k_pad, f_pad), w.dtype).at[:k_features, :f_features].set(w.T)
         for w, _ in layer_params])
    b_stack = jnp.stack(
        [jnp.zeros((1, f_pad), b.dtype).at[0, :f_features].set(b)
         for _, b in layer_params])
    return w_stack, b_stack, k_features, f_features


def _simulate_output_shape(x_shape, k_features, f_features, n_layers):
    """Per-layer shape effects of Linear -> LeakyReLU -> squeeze(1).  These are
    pure shape ops on the row-major flattened slab, so only the final shape is
    needed for the reshape after the fused kernel."""
    shape = tuple(x_shape)
    for layer in range(n_layers):
        assert shape[-1] == k_features, (
            f"layer {layer}: feature dim {shape[-1]} != in_features {k_features}")
        shape = shape[:-1] + (f_features,)
        if len(shape) > 1 and shape[1] == 1:   # torch .squeeze(1)
            shape = shape[:1] + shape[2:]
    return shape


def encoder2_forward(x, memory, prepared_params):
    """Encoder2.forward: the whole cloned-layer stack in one fused kernel."""
    # TODO(synk): `memory` is accepted for signature parity with Encoder2 but is
    # never consumed, since `module.forward` only uses `x`.
    del memory
    w_stack, b_stack, k_features, f_features = prepared_params
    n_layers = w_stack.shape[0]
    out_shape = _simulate_output_shape(x.shape, k_features, f_features, n_layers)
    return _encoder2_apply_fused(
        x, w_stack, b_stack,
        k_features=k_features, f_features=f_features, out_shape=out_shape)


if __name__ == "__main__":
    key = jax.random.PRNGKey(0)
    kx, km, kw, kb = jax.random.split(key, 4)

    # Small shapes consistent with the module: Linear(size=32, out=32) so the
    # N-layer stack composes; x has a size-1 dim 1 so squeeze(1) is exercised.
    B, S, SIZE, OUT, N_LAYERS = 2, 1, 32, 32, 2

    x = jax.random.normal(kx, (B, S, SIZE), dtype=jnp.float32)
    memory = jax.random.normal(km, (B, 8, SIZE), dtype=jnp.float32)  # unused

    # clones() deep-copies one layer, so every layer shares identical params.
    bound = 1.0 / math.sqrt(SIZE)   # PyTorch nn.Linear init range
    weight = jax.random.uniform(kw, (OUT, SIZE), dtype=jnp.float32,
                                minval=-bound, maxval=bound)
    bias = jax.random.uniform(kb, (OUT,), dtype=jnp.float32,
                              minval=-bound, maxval=bound)
    layer_params = [(weight, bias)] * N_LAYERS

    prepared = prepare_encoder2_params(layer_params)   # hoisted, once
    out = jax.block_until_ready(encoder2_forward(x, memory, prepared))

    # Plain-JAX reference of the same forward pass (layer by layer).
    ref = x
    for w, b in layer_params:
        y = jnp.einsum("...k,fk->...f", ref, w) + b
        y = jnp.where(y >= 0.0, y, NEG_SLOPE * y)
        if y.ndim > 1 and y.shape[1] == 1:
            y = jnp.squeeze(y, axis=1)
        ref = y

    assert out.shape == ref.shape == (B, OUT), (out.shape, ref.shape)
    assert jnp.allclose(out, ref, atol=1e-5, rtol=1e-5)

    print("KERNEL_OK")
</pallas_src>

<mosaic_0001>
module attributes {stable_mosaic.version = 11 : i64} {
  func.func @kernel(%arg0: i32, %arg1: memref<8x128xf32, #tpu.memory_space<vmem>>, %arg2: memref<2x128x128xf32, #tpu.memory_space<vmem>>, %arg3: memref<2x1x128xf32, #tpu.memory_space<vmem>>, %arg4: memref<8x128xf32, #tpu.memory_space<vmem>>) attributes {dimension_semantics = [#tpu.dimension_semantics<parallel>], iteration_bounds = array<i64: 1>, scalar_prefetch = 0 : i64, scratch_operands = 0 : i64, tpu.core_type = #tpu.core_type<tc>, window_params = [{transform_indices = @transform_0, window_bounds = array<i64: 8, 128>}, {pipeline_mode = #tpu.pipeline_mode<synchronous>, transform_indices = @transform_1, window_bounds = array<i64: 2, 128, 128>}, {pipeline_mode = #tpu.pipeline_mode<synchronous>, transform_indices = @transform_2, window_bounds = array<i64: 2, 1, 128>}, {transform_indices = @transform_3, window_bounds = array<i64: 8, 128>}]} {
    %c0 = arith.constant 0 : index
    %c0_0 = arith.constant 0 : index
    %0 = vector.load %arg1[%c0, %c0_0] : memref<8x128xf32, #tpu.memory_space<vmem>>, vector<8x128xf32>
    %c0_1 = arith.constant 0 : index
    %c0_2 = arith.constant 0 : index
    %c0_3 = arith.constant 0 : index
    %1 = vector.load %arg2[%c0_1, %c0_2, %c0_3] : memref<2x128x128xf32, #tpu.memory_space<vmem>>, vector<1x128x128xf32>
    %2 = vector.shape_cast %1 : vector<1x128x128xf32> to vector<128x128xf32>
    %cst = arith.constant dense<0.000000e+00> : vector<8x128xf32>
    %3 = tpu.matmul %0, %2, %cst {dimension_numbers = #tpu.dot_dimension_numbers<[1], [0], [0], [1], [0, 0, 1, 1], [], []>} : vector<8x128xf32>, vector<128x128xf32>, vector<8x128xf32> -> vector<8x128xf32>
    %c0_4 = arith.constant 0 : index
    %c0_5 = arith.constant 0 : index
    %c0_6 = arith.constant 0 : index
    %4 = vector.load %arg3[%c0_4, %c0_5, %c0_6] : memref<2x1x128xf32, #tpu.memory_space<vmem>>, vector<1x1x128xf32>
    %5 = vector.shape_cast %4 : vector<1x1x128xf32> to vector<1x128xf32>
    %6 = vector.broadcast %5 : vector<1x128xf32> to vector<8x128xf32>
    %7 = arith.addf %3, %6 : vector<8x128xf32>
    %cst_7 = arith.constant 0.000000e+00 : f32
    %8 = vector.broadcast %cst_7 : f32 to vector<8x128xf32>
    %9 = arith.cmpf oge, %7, %8 : vector<8x128xf32>
    %cst_8 = arith.constant 0.00999999977 : f32
    %10 = vector.broadcast %cst_8 : f32 to vector<8x128xf32>
    %11 = arith.mulf %10, %7 : vector<8x128xf32>
    %12 = arith.select %9, %7, %11 : vector<8x128xi1>, vector<8x128xf32>
    %c1 = arith.constant 1 : index
    %c0_9 = arith.constant 0 : index
    %c0_10 = arith.constant 0 : index
    %13 = vector.load %arg2[%c1, %c0_9, %c0_10] : memref<2x128x128xf32, #tpu.memory_space<vmem>>, vector<1x128x128xf32>
    %14 = vector.shape_cast %13 : vector<1x128x128xf32> to vector<128x128xf32>
    %cst_11 = arith.constant dense<0.000000e+00> : vector<8x128xf32>
    %15 = tpu.matmul %12, %14, %cst_11 {dimension_numbers = #tpu.dot_dimension_numbers<[1], [0], [0], [1], [0, 0, 1, 1], [], []>} : vector<8x128xf32>, vector<128x128xf32>, vector<8x128xf32> -> vector<8x128xf32>
    %c1_12 = arith.constant 1 : index
    %c0_13 = arith.constant 0 : index
    %c0_14 = arith.constant 0 : index
    %16 = vector.load %arg3[%c1_12, %c0_13, %c0_14] : memref<2x1x128xf32, #tpu.memory_space<vmem>>, vector<1x1x128xf32>
    %17 = vector.shape_cast %16 : vector<1x1x128xf32> to vector<1x128xf32>
    %18 = vector.broadcast %17 : vector<1x128xf32> to vector<8x128xf32>
    %19 = arith.addf %15, %18 : vector<8x128xf32>
    %cst_15 = arith.constant 0.000000e+00 : f32
    %20 = vector.broadcast %cst_15 : f32 to vector<8x128xf32>
    %21 = arith.cmpf oge, %19, %20 : vector<8x128xf32>
    %cst_16 = arith.constant 0.00999999977 : f32
    %22 = vector.broadcast %cst_16 : f32 to vector<8x128xf32>
    %23 = arith.mulf %22, %19 : vector<8x128xf32>
    %24 = arith.select %21, %19, %23 : vector<8x128xi1>, vector<8x128xf32>
    %c0_17 = arith.constant 0 : index
    %c0_18 = arith.constant 0 : index
    %25 = vector.load %arg4[%c0_17, %c0_18] : memref<8x128xf32, #tpu.memory_space<vmem>>, vector<8x128xf32>
    tpu.vector_store %arg4[%c0_17, %c0_18], %24 {strides = array<i32>} : memref<8x128xf32, #tpu.memory_space<vmem>>, vector<8x128xf32>,
    return
  }
  func.func @transform_0(%arg0: i32) -> (i32, i32) {
    %c0_i32 = arith.constant 0 : i32
    %c0_i32_0 = arith.constant 0 : i32
    return %arg0, %c0_i32 : i32, i32
  }
  func.func @transform_1(%arg0: i32) -> (i32, i32, i32) {
    %c0_i32 = arith.constant 0 : i32
    %c0_i32_0 = arith.constant 0 : i32
    %c0_i32_1 = arith.constant 0 : i32
    %c0_i32_2 = arith.constant 0 : i32
    return %c0_i32, %c0_i32_0, %c0_i32_1 : i32, i32, i32
  }
  func.func @transform_2(%arg0: i32) -> (i32, i32, i32) {
    %c0_i32 = arith.constant 0 : i32
    %c0_i32_0 = arith.constant 0 : i32
    %c0_i32_1 = arith.constant 0 : i32
    %c0_i32_2 = arith.constant 0 : i32
    return %c0_i32, %c0_i32_0, %c0_i32_1 : i32, i32, i32
  }
  func.func @transform_3(%arg0: i32) -> (i32, i32) {
    %c0_i32 = arith.constant 0 : i32
    %c0_i32_0 = arith.constant 0 : i32
    return %arg0, %c0_i32 : i32, i32
  }
}

</mosaic_0001>

<llo_original>
// kernel: _encoder2_apply_fused.1
$region0: #{_encoder2_apply_fused.1}
  #allocation0 [shape = 'u32[]', space=smem, size = 0x4, offset = 0x4, fixed_abs, tag = 'smem constant byte address 0x4 - core index']
  #allocation1 [shape = 'u32[144,128]{1,0:T(1,128)}', space=vmem, size = 0x12000, scoped, tag = 'internal scratch']
  %s0 = inlined_call_operand.vmem [shape: f32[8,128], index: 0, kind: input, shape index: {}]
  %s1 = inlined_call_operand.hbm [shape: f32[2,128,128], index: 1, kind: input, shape index: {}]
  %s2 = inlined_call_operand.vmem [shape: f32[2,1,128], index: 2, kind: input, shape index: {}]
  %s3 = inlined_call_operand.vmem [shape: f32[8,128], index: 3, kind: output, shape index: {}]
  %s4 = sld [smem:[#allocation0]]
  $region26: #{_encoder2_apply_fused.1} parent=0
    _
  %s6 = ssub.s32 1, %s4
  %s7 = scalar_select 0, %s6, %s4
  $region1: #{_encoder2_apply_fused.1} parent=0
    #allocation2 [shape = 'u8[131072]{0}', space=vmem, size = 0x20000, scoped, tag = 'input window, operand 1, single buffered']
    #allocation3 [shape = 's32[1]{0}', space=sflag, size = 0x4, scoped, tag = 'scoped memory for _encoder2_apply_fused.1']
    %8 = vsyncpa [#allocation3], 0
    // Predicated region
    $region2: #{_encoder2_apply_fused.1} parent=1 // pred_check
      _
    $region3: #{_encoder2_apply_fused.1} parent=1 // pred_check_branch
      %10 = sbr.rel (0) target = $region5
    $region4: #{_encoder2_apply_fused.1} parent=1 // pred_region
      _
    $region5: #{_encoder2_apply_fused.1} parent=1 // pred_fallthru
      _
    // Predicated region
    $region6: #{_encoder2_apply_fused.1} parent=1 // pred_check
      _
    $region7: #{_encoder2_apply_fused.1} parent=1 // pred_check_branch
      %12 = sbr.rel (0) target = $region9
    $region8: #{_encoder2_apply_fused.1} parent=1 // pred_region
      %s14 = ssub.s32 4096, 4096
      %15 = vsyncadd [#allocation3], %s14
      %s16 = sshll.u32 [#allocation2], 4
      %s17 = int_to_ptr.vmem [resolvable:$true] %s16
      %22 = dma.hbm_to_vmem [thread:$0]  %s1, 4096, %s17, [#allocation3], 128, 128, 8
    $region9: #{_encoder2_apply_fused.1} parent=1 // pred_fallthru
      _
    // Predicated region
    $region10: #{_encoder2_apply_fused.1} parent=1 // pred_check
      _
    $region11: #{_encoder2_apply_fused.1} parent=1 // pred_check_branch
      %24 = sbr.rel (0) target = $region13
    $region12: #{_encoder2_apply_fused.1} parent=1 // pred_region
      _
    $region13: #{_encoder2_apply_fused.1} parent=1 // pred_fallthru
      _
    // Predicated region
    $region14: #{_encoder2_apply_fused.1} parent=1 // pred_check
      _
    $region15: #{_encoder2_apply_fused.1} parent=1 // pred_check_branch
      %26 = sbr.rel (0) target = $region17
    $region16: #{_encoder2_apply_fused.1} parent=1 // pred_region
      %27 = dma.done [#allocation3], 4096
    $region17: #{_encoder2_apply_fused.1} parent=1 // pred_fallthru
      _
    %v28 = vld [vmem:[%s0] sm:$0xff]
    %v29 = vld [vmem:[#allocation2] sm:$0xff]
    %v30 = vld [vmem:[#allocation2 + $0x8] sm:$0xff]
    %v31 = vld [vmem:[#allocation2 + $0x10] sm:$0xff]
    %v32 = vld [vmem:[#allocation2 + $0x18] sm:$0xff]
    %v33 = vld [vmem:[#allocation2 + $0x20] sm:$0xff]
    %v34 = vld [vmem:[#allocation2 + $0x28] sm:$0xff]
    %v35 = vld [vmem:[#allocation2 + $0x30] sm:$0xff]
    %v36 = vld [vmem:[#allocation2 + $0x38] sm:$0xff]
    %v37 = vld [vmem:[#allocation2 + $0x40] sm:$0xff]
    %v38 = vld [vmem:[#allocation2 + $0x48] sm:$0xff]
    %v39 = vld [vmem:[#allocation2 + $0x50] sm:$0xff]
    %v40 = vld [vmem:[#allocation2 + $0x58] sm:$0xff]
    %v41 = vld [vmem:[#allocation2 + $0x60] sm:$0xff]
    %v42 = vld [vmem:[#allocation2 + $0x68] sm:$0xff]
    %v43 = vld [vmem:[#allocation2 + $0x70] sm:$0xff]
    %v44 = vld [vmem:[#allocation2 + $0x78] sm:$0xff]
    %v45 = vld [vmem:[%s2] sm:$0x1]
    %v47 = vlaneseq
    %v48 = vshrl.u32 %v47, 7
    %v49 = vsub.s32 0, %v48
    %v50 = vrot.slane %v45, %v49
    %52 = vmatprep.subr.mxu0 0.0
    %53 = vmatpush1.msra.mxu0 %v29
    %54 = vmatprep.subr.mxu0 0.0
    %55 = vmatpush1.msra.mxu0 %v30
    %56 = vmatprep.subr.mxu0 0.0
    %57 = vmatpush1.msra.mxu0 %v31
    %58 = vmatprep.subr.mxu0 0.0
    %59 = vmatpush1.msra.mxu0 %v32
    %60 = vmatprep.subr.mxu0 0.0
    %61 = vmatpush1.msra.mxu0 %v33
    %62 = vmatprep.subr.mxu0 0.0
    %63 = vmatpush1.msra.mxu0 %v34
    %64 = vmatprep.subr.mxu0 0.0
    %65 = vmatpush1.msra.mxu0 %v35
    %66 = vmatprep.subr.mxu0 0.0
    %67 = vmatpush1.msra.mxu0 %v36
    %68 = vmatprep.subr.mxu0 0.0
    %69 = vmatpush1.msra.mxu0 %v37
    %70 = vmatprep.subr.mxu0 0.0
    %71 = vmatpush1.msra.mxu0 %v38
    %72 = vmatprep.subr.mxu0 0.0
    %73 = vmatpush1.msra.mxu0 %v39
    %74 = vmatprep.subr.mxu0 0.0
    %75 = vmatpush1.msra.mxu0 %v40
    %76 = vmatprep.subr.mxu0 0.0
    %77 = vmatpush1.msra.mxu0 %v41
    %78 = vmatprep.subr.mxu0 0.0
    %79 = vmatpush1.msra.mxu0 %v42
    %80 = vmatprep.subr.mxu0 0.0
    %81 = vmatpush1.msra.mxu0 %v43
    %82 = vmatprep.subr.mxu0 0.0
    %83 = vmatpush1.msra.mxu0 %v44
    %84 = vmatprep.subr.mxu0 0.0
    %85 = vmatpush1.msra.mxu0 0.0
    %86 = vmatprep.subr.mxu0 0.0
    %87 = vmatpush1.msra.mxu0 0.0
    %88 = vmatprep.subr.mxu0 0.0
    %89 = vmatpush1.msra.mxu0 0.0
    %90 = vmatprep.subr.mxu0 0.0
    %91 = vmatpush1.msra.mxu0 0.0
    %92 = vmatprep.subr.mxu0 0.0
    %93 = vmatpush1.msra.mxu0 0.0
    %94 = vmatprep.subr.mxu0 0.0
    %95 = vmatpush1.msra.mxu0 0.0
    %96 = vmatprep.subr.mxu0 0.0
    %97 = vmatpush1.msra.mxu0 0.0
    %98 = vmatprep.subr.mxu0 0.0
    %99 = vmatpush1.msra.mxu0 0.0
    %100 = vmatprep.subr.mxu0 0.0
    %101 = vmatpush1.msra.mxu0 0.0
    %102 = vmatprep.subr.mxu0 0.0
    %103 = vmatpush1.msra.mxu0 0.0
    %104 = vmatprep.subr.mxu0 0.0
    %105 = vmatpush1.msra.mxu0 0.0
    %106 = vmatprep.subr.mxu0 0.0
    %107 = vmatpush1.msra.mxu0 0.0
    %108 = vmatprep.subr.mxu0 0.0
    %109 = vmatpush1.msra.mxu0 0.0
    %110 = vmatprep.subr.mxu0 0.0
    %111 = vmatpush1.msra.mxu0 0.0
    %112 = vmatprep.subr.mxu0 0.0
    %113 = vmatpush1.msra.mxu0 0.0
    %114 = vmatprep.subr.mxu0 0.0
    %115 = vmatpush1.msra.mxu0 0.0
    %116 = vmatprep.mubr.f32.mxu0 0.0
    %117 = vmatmul.mubr.f32.gmra.mrb[0].mxu0 %v28
    %v118 = vpop.f32.mrb[0].mxu0
    %v119 = vadd.f32 %v50, %v118
    %v120 = vpop.f32.mrb[0].mxu0
    %121 = vdwg.mxu0
    %vm122 = vcmp.ge.f32.partialorder %v119, 0.0
    %v123 = vmul.f32 %v119, 0.01
    %v124 = vsel %vm122, %v119, %v123
    %s125 = scalar_lea.vmem [#allocation2], 128
    %v126 = vld [vmem:[%s125] sm:$0xff]
    %v127 = vld [vmem:[%s125 + $0x8] sm:$0xff]
    %v128 = vld [vmem:[%s125 + $0x10] sm:$0xff]
    %v129 = vld [vmem:[%s125 + $0x18] sm:$0xff]
    %v130 = vld [vmem:[%s125 + $0x20] sm:$0xff]
    %v131 = vld [vmem:[%s125 + $0x28] sm:$0xff]
    %v132 = vld [vmem:[%s125 + $0x30] sm:$0xff]
    %v133 = vld [vmem:[%s125 + $0x38] sm:$0xff]
    %v134 = vld [vmem:[%s125 + $0x40] sm:$0xff]
    %v135 = vld [vmem:[%s125 + $0x48] sm:$0xff]
    %v136 = vld [vmem:[%s125 + $0x50] sm:$0xff]
    %v137 = vld [vmem:[%s125 + $0x58] sm:$0xff]
    %v138 = vld [vmem:[%s125 + $0x60] sm:$0xff]
    %v139 = vld [vmem:[%s125 + $0x68] sm:$0xff]
    %v140 = vld [vmem:[%s125 + $0x70] sm:$0xff]
    %v141 = vld [vmem:[%s125 + $0x78] sm:$0xff]
    %s142 = scalar_lea.vmem %s2, 1
    %v143 = vld [vmem:[%s142] sm:$0x1]
    %v145 = vlaneseq
    %v146 = vshrl.u32 %v145, 7
    %v147 = vsub.s32 0, %v146
    %v148 = vrot.slane %v143, %v147
    %150 = vmatprep.subr.mxu0 0.0
    %151 = vmatpush1.msra.mxu0 %v126
    %152 = vmatprep.subr.mxu0 0.0
    %153 = vmatpush1.msra.mxu0 %v127
    %154 = vmatprep.subr.mxu0 0.0
    %155 = vmatpush1.msra.mxu0 %v128
    %156 = vmatprep.subr.mxu0 0.0
    %157 = vmatpush1.msra.mxu0 %v129
    %158 = vmatprep.subr.mxu0 0.0
    %159 = vmatpush1.msra.mxu0 %v130
    %160 = vmatprep.subr.mxu0 0.0
    %161 = vmatpush1.msra.mxu0 %v131
    %162 = vmatprep.subr.mxu0 0.0
    %163 = vmatpush1.msra.mxu0 %v132
    %164 = vmatprep.subr.mxu0 0.0
    %165 = vmatpush1.msra.mxu0 %v133
    %166 = vmatprep.subr.mxu0 0.0
    %167 = vmatpush1.msra.mxu0 %v134
    %168 = vmatprep.subr.mxu0 0.0
    %169 = vmatpush1.msra.mxu0 %v135
    %170 = vmatprep.subr.mxu0 0.0
    %171 = vmatpush1.msra.mxu0 %v136
    %172 = vmatprep.subr.mxu0 0.0
    %173 = vmatpush1.msra.mxu0 %v137
    %174 = vmatprep.subr.mxu0 0.0
    %175 = vmatpush1.msra.mxu0 %v138
    %176 = vmatprep.subr.mxu0 0.0
    %177 = vmatpush1.msra.mxu0 %v139
    %178 = vmatprep.subr.mxu0 0.0
    %179 = vmatpush1.msra.mxu0 %v140
    %180 = vmatprep.subr.mxu0 0.0
    %181 = vmatpush1.msra.mxu0 %v141
    %182 = vmatprep.subr.mxu0 0.0
    %183 = vmatpush1.msra.mxu0 0.0
    %184 = vmatprep.subr.mxu0 0.0
    %185 = vmatpush1.msra.mxu0 0.0
    %186 = vmatprep.subr.mxu0 0.0
    %187 = vmatpush1.msra.mxu0 0.0
    %188 = vmatprep.subr.mxu0 0.0
    %189 = vmatpush1.msra.mxu0 0.0
    %190 = vmatprep.subr.mxu0 0.0
    %191 = vmatpush1.msra.mxu0 0.0
    %192 = vmatprep.subr.mxu0 0.0
    %193 = vmatpush1.msra.mxu0 0.0
    %194 = vmatprep.subr.mxu0 0.0
    %195 = vmatpush1.msra.mxu0 0.0
    %196 = vmatprep.subr.mxu0 0.0
    %197 = vmatpush1.msra.mxu0 0.0
    %198 = vmatprep.subr.mxu0 0.0
    %199 = vmatpush1.msra.mxu0 0.0
    %200 = vmatprep.subr.mxu0 0.0
    %201 = vmatpush1.msra.mxu0 0.0
    %202 = vmatprep.subr.mxu0 0.0
    %203 = vmatpush1.msra.mxu0 0.0
    %204 = vmatprep.subr.mxu0 0.0
    %205 = vmatpush1.msra.mxu0 0.0
    %206 = vmatprep.subr.mxu0 0.0
    %207 = vmatpush1.msra.mxu0 0.0
    %208 = vmatprep.subr.mxu0 0.0
    %209 = vmatpush1.msra.mxu0 0.0
    %210 = vmatprep.subr.mxu0 0.0
    %211 = vmatpush1.msra.mxu0 0.0
    %212 = vmatprep.subr.mxu0 0.0
    %213 = vmatpush1.msra.mxu0 0.0
    %214 = vmatprep.mubr.f32.mxu0 0.0
    %215 = vmatmul.mubr.f32.gmra.mrb[0].mxu0 %v124
    %v216 = vpop.f32.mrb[0].mxu0
    %v217 = vadd.f32 %v148, %v216
    %v218 = vpop.f32.mrb[0].mxu0
    %219 = vdwg.mxu0
    %vm220 = vcmp.ge.f32.partialorder %v217, 0.0
    %v221 = vmul.f32 %v217, 0.01
    %v222 = vsel %vm220, %v217, %v221
    %223 = vst [vmem:[%s3] sm:$0xff] %v222
    // Predicated region
    $region18: #{_encoder2_apply_fused.1} parent=1 // pred_check
      _
    $region19: #{_encoder2_apply_fused.1} parent=1 // pred_check_branch
      %225 = sbr.rel (0) target = $region21
    $region20: #{_encoder2_apply_fused.1} parent=1 // pred_region
      _
    $region21: #{_encoder2_apply_fused.1} parent=1 // pred_fallthru
      _
    // Predicated region
    $region22: #{_encoder2_apply_fused.1} parent=1 // pred_check
      _
    $region23: #{_encoder2_apply_fused.1} parent=1 // pred_check_branch
      %227 = sbr.rel (0) target = $region25
    $region24: #{_encoder2_apply_fused.1} parent=1 // pred_region
      _
    $region25: #{_encoder2_apply_fused.1} parent=1 // pred_fallthru
      _
    %228 = vsyncpa [#allocation3], 1

</llo_original>
